<compile_context>
chip_gen: v7x
topology: tpu7x:2x2x1
jax: 0.10.0
libtpu: 0.0.40
codegen_flags: <defaults>
</compile_context>

<pallas_src>
import jax
import jax.numpy as jnp
from jax import lax
from jax.experimental import pallas as pl
from jax.experimental.pallas import tpu as pltpu


_BLOCK_N = 256     # batch-block size for large N (multiple of 8, 256-row MXU tiles)
_G = 128           # lane stride of one pool-tap group (keeps slices 128-aligned)


# ------------------------------ fused kernel ------------------------------- #

def _pool4(y):
    # y: (Nb, 4*_G); elementwise max over the four 128-lane pool-tap groups.
    return jnp.maximum(jnp.maximum(y[:, 0 * _G:1 * _G], y[:, 1 * _G:2 * _G]),
                       jnp.maximum(y[:, 2 * _G:3 * _G], y[:, 3 * _G:4 * _G]))


def _simplenet_kernel(x_ref,    # (Nb, 432)  HWC-flattened input slab
                      m1_ref,   # (432, 512) conv1 as dense matrix, pool-grouped cols
                      b1_ref,   # (1, 512)   conv1 bias broadcast to those cols
                      m2_ref,   # (128, 512) conv2 as dense matrix (rows 36.. zero)
                      b2_ref,   # (1, 512)
                      wf_ref,   # (128, 2)   fc weight (rows 32.. zero)
                      bf_ref,   # (1, 2)
                      out_ref): # (Nb, 2)
    f32 = jnp.float32
    x = x_ref[...]                                                     # (Nb, 432)

    # conv1 + bias + ReLU + 2x2 maxpool  ->  (Nb, 128) lane-dense (36 live lanes)
    y1 = jnp.dot(x, m1_ref[...], preferred_element_type=f32) + b1_ref[...]
    p1 = _pool4(jnp.maximum(y1, 0.0))

    # conv2 + bias + ReLU + 2x2 maxpool  ->  (Nb, 128) lane-dense (32 live lanes)
    y2 = jnp.dot(p1, m2_ref[...], preferred_element_type=f32) + b2_ref[...]
    p2 = _pool4(jnp.maximum(y2, 0.0))

    # fully connected; one coalesced (Nb, 2) store for the whole block.
    out_ref[...] = jnp.dot(p2, wf_ref[...], preferred_element_type=f32) + bf_ref[...]


# ---------------------- trace-time weight re-layouts ------------------------ #

def _conv2x2_pool_matrix(w_oihw, s):
    """Dense matrix for a 2x2 / stride-1 / pad-1 conv on an (s, s, Cin) HWC input,
    emitting only the conv outputs needed by a floor-mode 2x2 maxpool, grouped by
    pool tap (dh, dw) on 128-lane boundaries.

    Returns (s*s*Cin, 4*_G) f32 with column  g*_G + oh*(P*Cout) + ow*Cout + co,
    where g = dh*2 + dw and the conv output position is (2*oh+dh, 2*ow+dw).
    """
    cout, cin, _, _ = w_oihw.shape
    p = (s + 1) // 2                                       # pooled spatial extent
    wt = jnp.transpose(w_oihw, (2, 3, 1, 0)).astype(jnp.float32)   # (2,2,Cin,Cout)

    hin = jnp.arange(s)
    oh = jnp.arange(p)
    d = jnp.arange(2)
    # kernel tap index hit by input row hin at conv output row r = 2*oh + d
    k = hin[:, None, None] - (2 * oh[None, :, None] + d[None, None, :]) + 1  # (s,p,2)
    valid = (k >= 0) & (k <= 1)
    kc = jnp.clip(k, 0, 1)

    khb = kc[:, :, :, None, None, None]                    # (s,p,2,1,1,1)
    kwb = kc[None, None, None, :, :, :]                    # (1,1,1,s,p,2)
    mfull = wt[khb, kwb]                                   # (s,p,2,s,p,2,Cin,Cout)
    mask = valid[:, :, :, None, None, None] & valid[None, None, None, :, :, :]
    mfull = mfull * mask[..., None, None].astype(jnp.float32)

    # rows (hin, win, cin);  cols (dh, dw, oh, ow, cout) padded to _G per group
    m = jnp.transpose(mfull, (0, 3, 6, 2, 5, 1, 4, 7))     # (s,s,Cin,2,2,p,p,Cout)
    m = m.reshape(s * s * cin, 4, p * p * cout)
    m = jnp.pad(m, ((0, 0), (0, 0), (0, _G - p * p * cout)))
    return m.reshape(s * s * cin, 4 * _G)


def _round_up(a, b):
    return (a + b - 1) // b * b


# --------------------------------- wrapper ---------------------------------- #

@jax.jit
def simplenet_forward(x_nchw, params):
    W1, b1, W2, b2, Wfc, bfc = params
    N = x_nchw.shape[0]
    Nb = _BLOCK_N if N >= _BLOCK_N else _round_up(max(N, 1), 8)
    N_pad = _round_up(N, Nb)

    # x: NCHW -> NHWC -> lane-dense (N, 432) slab (single transpose + reshape),
    # zero-padded to a multiple of the batch block.
    xs = jnp.transpose(x_nchw.astype(jnp.float32), (0, 2, 3, 1)).reshape(N, 432)
    xs = jnp.pad(xs, ((0, N_pad - N), (0, 0)))

    # Trace-time weight re-layouts (tiny).
    m1 = _conv2x2_pool_matrix(W1, 6)                                     # (432, 512)
    m2 = jnp.pad(_conv2x2_pool_matrix(W2, 3), ((0, _G - 36), (0, 0)))    # (128, 512)
    wf = jnp.pad(
        jnp.transpose(Wfc.reshape(2, 8, 2, 2).astype(jnp.float32),
                      (2, 3, 1, 0)).reshape(32, 2),
        ((0, _G - 32), (0, 0)))                                          # (128, 2)
    b1r = jnp.tile(jnp.pad(jnp.tile(b1.astype(jnp.float32), 9), (0, _G - 36)),
                   4).reshape(1, 4 * _G)
    b2r = jnp.tile(jnp.pad(jnp.tile(b2.astype(jnp.float32), 4), (0, _G - 32)),
                   4).reshape(1, 4 * _G)
    bfr = bfc.astype(jnp.float32).reshape(1, 2)

    flops = 2 * N_pad * (432 * 512 + 128 * 512 + 128 * 2)
    bytes_accessed = 4 * (N_pad * 432 + N_pad * 2 +
                          432 * 512 + 128 * 512 + 128 * 2 + 2 * 512 + 2)

    out = pl.pallas_call(
        _simplenet_kernel,
        out_shape=jax.ShapeDtypeStruct((N_pad, 2), jnp.float32),
        grid=(N_pad // Nb,),
        in_specs=[
            pl.BlockSpec((Nb, 432), lambda i: (i, 0)),       # x block
            pl.BlockSpec((432, 4 * _G), lambda i: (0, 0)),   # M1 (resident)
            pl.BlockSpec((1, 4 * _G), lambda i: (0, 0)),     # b1 row
            pl.BlockSpec((_G, 4 * _G), lambda i: (0, 0)),    # M2 (resident)
            pl.BlockSpec((1, 4 * _G), lambda i: (0, 0)),     # b2 row
            pl.BlockSpec((_G, 2), lambda i: (0, 0)),         # fc weight
            pl.BlockSpec((1, 2), lambda i: (0, 0)),          # fc bias
        ],
        out_specs=pl.BlockSpec((Nb, 2), lambda i: (i, 0)),
        compiler_params=pltpu.CompilerParams(dimension_semantics=("parallel",)),
        cost_estimate=pl.CostEstimate(flops=flops, transcendentals=0,
                                      bytes_accessed=bytes_accessed),
    )(xs, m1, b1r, m2, b2r, wf, bfr)
    return out[:N]


# --------------------------- pure-JAX reference ----------------------------- #

def _reference(x, params):
    W1, b1, W2, b2, Wfc, bfc = params

    def conv(x, w, b):
        y = lax.conv_general_dilated(
            x, w, window_strides=(1, 1), padding=((1, 1), (1, 1)),
            dimension_numbers=("NCHW", "OIHW", "NCHW"))
        return y + b[None, :, None, None]

    def pool(x):
        return lax.reduce_window(x, -jnp.inf, lax.max,
                                 (1, 1, 2, 2), (1, 1, 2, 2), "VALID")

    y = pool(jax.nn.relu(conv(x, W1, b1)))
    y = pool(jax.nn.relu(conv(y, W2, b2)))
    y = y.reshape(y.shape[0], -1)
    return y @ Wfc.T + bfc[None, :]


# ---------------------------------- main ------------------------------------ #

if __name__ == "__main__":
    key = jax.random.PRNGKey(0)
    kx, k1, k2, k3, k4, k5, k6 = jax.random.split(key, 7)

    # Deterministic synthetic parameters (PyTorch shapes).
    W1 = jax.random.normal(k1, (4, 12, 2, 2), jnp.float32) * 0.1   # conv1 weight (OIHW)
    b1 = jax.random.normal(k2, (4,), jnp.float32) * 0.1
    W2 = jax.random.normal(k3, (8, 4, 2, 2), jnp.float32) * 0.1    # conv4 weight (OIHW)
    b2 = jax.random.normal(k4, (8,), jnp.float32) * 0.1
    Wfc = jax.random.normal(k5, (2, 32), jnp.float32) * 0.1        # fc weight (out, in)
    bfc = jax.random.normal(k6, (2,), jnp.float32) * 0.1
    params = (W1, b1, W2, b2, Wfc, bfc)

    # Input: N=2, C=12, H=W=6 -> conv pipeline ends at (N, 8, 2, 2) -> fc(32, 2).
    x = jax.random.normal(kx, (2, 12, 6, 6), jnp.float32)

    out = jax.block_until_ready(simplenet_forward(x, params))
    ref = jax.block_until_ready(_reference(x, params))

    assert out.shape == (2, 2), out.shape
    assert jnp.allclose(out, ref, atol=1e-4, rtol=1e-4), (out, ref)
    print("KERNEL_OK")
</pallas_src>

<mosaic_0001>
module attributes {stable_mosaic.version = 11 : i64} {
  func.func @_simplenet_kernel(%arg0: i32, %arg1: memref<8x432xf32, #tpu.memory_space<vmem>>, %arg2: memref<432x512xf32, #tpu.memory_space<vmem>>, %arg3: memref<1x512xf32, #tpu.memory_space<vmem>>, %arg4: memref<128x512xf32, #tpu.memory_space<vmem>>, %arg5: memref<1x512xf32, #tpu.memory_space<vmem>>, %arg6: memref<128x2xf32, #tpu.memory_space<vmem>>, %arg7: memref<1x2xf32, #tpu.memory_space<vmem>>, %arg8: memref<8x2xf32, #tpu.memory_space<vmem>>) attributes {dimension_semantics = [#tpu.dimension_semantics<parallel>], iteration_bounds = array<i64: 1>, scalar_prefetch = 0 : i64, scratch_operands = 0 : i64, tpu.core_type = #tpu.core_type<tc>, window_params = [{transform_indices = @transform_0, window_bounds = array<i64: 8, 432>}, {pipeline_mode = #tpu.pipeline_mode<synchronous>, transform_indices = @transform_1, window_bounds = array<i64: 432, 512>}, {pipeline_mode = #tpu.pipeline_mode<synchronous>, transform_indices = @transform_2, window_bounds = array<i64: 1, 512>}, {pipeline_mode = #tpu.pipeline_mode<synchronous>, transform_indices = @transform_3, window_bounds = array<i64: 128, 512>}, {pipeline_mode = #tpu.pipeline_mode<synchronous>, transform_indices = @transform_4, window_bounds = array<i64: 1, 512>}, {pipeline_mode = #tpu.pipeline_mode<synchronous>, transform_indices = @transform_5, window_bounds = array<i64: 128, 2>}, {pipeline_mode = #tpu.pipeline_mode<synchronous>, transform_indices = @transform_6, window_bounds = array<i64: 1, 2>}, {transform_indices = @transform_7, window_bounds = array<i64: 8, 2>}]} {
    %c0 = arith.constant 0 : index
    %c0_0 = arith.constant 0 : index
    %0 = vector.load %arg1[%c0, %c0_0] : memref<8x432xf32, #tpu.memory_space<vmem>>, vector<8x432xf32>
    %c0_1 = arith.constant 0 : index
    %c0_2 = arith.constant 0 : index
    %1 = vector.load %arg2[%c0_1, %c0_2] : memref<432x512xf32, #tpu.memory_space<vmem>>, vector<432x512xf32>
    %cst = arith.constant dense<0.000000e+00> : vector<8x512xf32>
    %2 = tpu.matmul %0, %1, %cst {dimension_numbers = #tpu.dot_dimension_numbers<[1], [0], [0], [1], [0, 0, 1, 1], [], []>} : vector<8x432xf32>, vector<432x512xf32>, vector<8x512xf32> -> vector<8x512xf32>
    %c0_3 = arith.constant 0 : index
    %c0_4 = arith.constant 0 : index
    %3 = vector.load %arg3[%c0_3, %c0_4] : memref<1x512xf32, #tpu.memory_space<vmem>>, vector<1x512xf32>
    %4 = vector.broadcast %3 : vector<1x512xf32> to vector<8x512xf32>
    %5 = arith.addf %2, %4 : vector<8x512xf32>
    %cst_5 = arith.constant 0.000000e+00 : f32
    %6 = vector.broadcast %cst_5 : f32 to vector<8x512xf32>
    %7 = arith.maximumf %5, %6 : vector<8x512xf32>
    %8 = vector.extract_strided_slice %7 {offsets = [0, 0], sizes = [8, 128], strides = [1, 1]} : vector<8x512xf32> to vector<8x128xf32>
    %9 = vector.extract_strided_slice %7 {offsets = [0, 128], sizes = [8, 128], strides = [1, 1]} : vector<8x512xf32> to vector<8x128xf32>
    %10 = arith.maximumf %8, %9 : vector<8x128xf32>
    %11 = vector.extract_strided_slice %7 {offsets = [0, 256], sizes = [8, 128], strides = [1, 1]} : vector<8x512xf32> to vector<8x128xf32>
    %12 = vector.extract_strided_slice %7 {offsets = [0, 384], sizes = [8, 128], strides = [1, 1]} : vector<8x512xf32> to vector<8x128xf32>
    %13 = arith.maximumf %11, %12 : vector<8x128xf32>
    %14 = arith.maximumf %10, %13 : vector<8x128xf32>
    %c0_6 = arith.constant 0 : index
    %c0_7 = arith.constant 0 : index
    %15 = vector.load %arg4[%c0_6, %c0_7] : memref<128x512xf32, #tpu.memory_space<vmem>>, vector<128x512xf32>
    %cst_8 = arith.constant dense<0.000000e+00> : vector<8x512xf32>
    %16 = tpu.matmul %14, %15, %cst_8 {dimension_numbers = #tpu.dot_dimension_numbers<[1], [0], [0], [1], [0, 0, 1, 1], [], []>} : vector<8x128xf32>, vector<128x512xf32>, vector<8x512xf32> -> vector<8x512xf32>
    %c0_9 = arith.constant 0 : index
    %c0_10 = arith.constant 0 : index
    %17 = vector.load %arg5[%c0_9, %c0_10] : memref<1x512xf32, #tpu.memory_space<vmem>>, vector<1x512xf32>
    %18 = vector.broadcast %17 : vector<1x512xf32> to vector<8x512xf32>
    %19 = arith.addf %16, %18 : vector<8x512xf32>
    %cst_11 = arith.constant 0.000000e+00 : f32
    %20 = vector.broadcast %cst_11 : f32 to vector<8x512xf32>
    %21 = arith.maximumf %19, %20 : vector<8x512xf32>
    %22 = vector.extract_strided_slice %21 {offsets = [0, 0], sizes = [8, 128], strides = [1, 1]} : vector<8x512xf32> to vector<8x128xf32>
    %23 = vector.extract_strided_slice %21 {offsets = [0, 128], sizes = [8, 128], strides = [1, 1]} : vector<8x512xf32> to vector<8x128xf32>
    %24 = arith.maximumf %22, %23 : vector<8x128xf32>
    %25 = vector.extract_strided_slice %21 {offsets = [0, 256], sizes = [8, 128], strides = [1, 1]} : vector<8x512xf32> to vector<8x128xf32>
    %26 = vector.extract_strided_slice %21 {offsets = [0, 384], sizes = [8, 128], strides = [1, 1]} : vector<8x512xf32> to vector<8x128xf32>
    %27 = arith.maximumf %25, %26 : vector<8x128xf32>
    %28 = arith.maximumf %24, %27 : vector<8x128xf32>
    %c0_12 = arith.constant 0 : index
    %c0_13 = arith.constant 0 : index
    %29 = vector.load %arg6[%c0_12, %c0_13] : memref<128x2xf32, #tpu.memory_space<vmem>>, vector<128x2xf32>
    %cst_14 = arith.constant dense<0.000000e+00> : vector<8x2xf32>
    %30 = tpu.matmul %28, %29, %cst_14 {dimension_numbers = #tpu.dot_dimension_numbers<[1], [0], [0], [1], [0, 0, 1, 1], [], []>} : vector<8x128xf32>, vector<128x2xf32>, vector<8x2xf32> -> vector<8x2xf32>
    %c0_15 = arith.constant 0 : index
    %c0_16 = arith.constant 0 : index
    %31 = vector.load %arg7[%c0_15, %c0_16] : memref<1x2xf32, #tpu.memory_space<vmem>>, vector<1x2xf32>
    %32 = vector.broadcast %31 : vector<1x2xf32> to vector<8x2xf32>
    %33 = arith.addf %30, %32 : vector<8x2xf32>
    %c0_17 = arith.constant 0 : index
    %c0_18 = arith.constant 0 : index
    %34 = vector.load %arg8[%c0_17, %c0_18] : memref<8x2xf32, #tpu.memory_space<vmem>>, vector<8x2xf32>
    tpu.vector_store %arg8[%c0_17, %c0_18], %33 {strides = array<i32>} : memref<8x2xf32, #tpu.memory_space<vmem>>, vector<8x2xf32>,
    return
  }
  func.func @transform_0(%arg0: i32) -> (i32, i32) {
    %c0_i32 = arith.constant 0 : i32
    %c0_i32_0 = arith.constant 0 : i32
    return %arg0, %c0_i32 : i32, i32
  }
  func.func @transform_1(%arg0: i32) -> (i32, i32) {
    %c0_i32 = arith.constant 0 : i32
    %c0_i32_0 = arith.constant 0 : i32
    %c0_i32_1 = arith.constant 0 : i32
    return %c0_i32, %c0_i32_0 : i32, i32
  }
  func.func @transform_2(%arg0: i32) -> (i32, i32) {
    %c0_i32 = arith.constant 0 : i32
    %c0_i32_0 = arith.constant 0 : i32
    %c0_i32_1 = arith.constant 0 : i32
    return %c0_i32, %c0_i32_0 : i32, i32
  }
  func.func @transform_3(%arg0: i32) -> (i32, i32) {
    %c0_i32 = arith.constant 0 : i32
    %c0_i32_0 = arith.constant 0 : i32
    %c0_i32_1 = arith.constant 0 : i32
    return %c0_i32, %c0_i32_0 : i32, i32
  }
  func.func @transform_4(%arg0: i32) -> (i32, i32) {
    %c0_i32 = arith.constant 0 : i32
    %c0_i32_0 = arith.constant 0 : i32
    %c0_i32_1 = arith.constant 0 : i32
    return %c0_i32, %c0_i32_0 : i32, i32
  }
  func.func @transform_5(%arg0: i32) -> (i32, i32) {
    %c0_i32 = arith.constant 0 : i32
    %c0_i32_0 = arith.constant 0 : i32
    %c0_i32_1 = arith.constant 0 : i32
    return %c0_i32, %c0_i32_0 : i32, i32
  }
  func.func @transform_6(%arg0: i32) -> (i32, i32) {
    %c0_i32 = arith.constant 0 : i32
    %c0_i32_0 = arith.constant 0 : i32
    %c0_i32_1 = arith.constant 0 : i32
    return %c0_i32, %c0_i32_0 : i32, i32
  }
  func.func @transform_7(%arg0: i32) -> (i32, i32) {
    %c0_i32 = arith.constant 0 : i32
    %c0_i32_0 = arith.constant 0 : i32
    return %arg0, %c0_i32 : i32, i32
  }
}

</mosaic_0001>

<llo_original>
// kernel: tile.23
$region0: #{tile.23}
  #allocation0 [shape = 's32[1]{0}', space=sflag, size = 0x4, scoped, tag = 'scoped memory for tile.23']
  %s0 = inlined_call_operand.vmem [shape: f32[4], index: 0, kind: input, shape index: {}]
  %s1 = inlined_call_operand.vmem [shape: f32[9,4], index: 1, kind: output, shape index: {}]
  // Predicated region
  $region2: #{tile.23} parent=0 // pred_check
    _
  $region3: #{tile.23} parent=0 // pred_check_branch
    %3 = sbr.rel (0) target = $region5
  $region4: #{tile.23} parent=0 // pred_region
    _
  $region5: #{tile.23} parent=0 // pred_fallthru
    _
  %v4 = vld [vmem:[%s0] ss:$0 sm:$0xff]
  %5 = vst [vmem:[%s1] sm:$0xff] %v4
  %s6 = scalar_lea.vmem %s1, 8
  %7 = vst [vmem:[%s6] sm:$0xff] %v4

// kernel: tile.24
$region0: #{tile.24}
  %s0 = inlined_call_operand.vmem [shape: f32[9,4], index: 0, kind: input, shape index: {}]
  %s1 = inlined_call_operand.vmem [shape: f32[36], index: 1, kind: output, shape index: {}]
  $region1: #{tile.24} parent=0
    #allocation0 [shape = 'u8[4096]{0}', space=vmem, size = 0x1000, scoped, tag = 'scoped mem for output reshape']
    %v2 = vld [vmem:[%s0] sm:$0x1]
    %vm3 = vcmask 31744
    %4 = vst.msk [vmem:[#allocation0] sm:$0x1] %vm3, %v2
    %s5 = scalar_lea.vmem %s0, 8
    %v6 = vld [vmem:[%s5] sm:$0x1]
    %7 = vrot.lane.b32.xlu0 %v6, 32
    %v8 = vpop.permute.xlu0 %7
    %vm9 = vcmask 294144
    %10 = vst.msk [vmem:[#allocation0] sm:$0x1] %vm9, %v8
    %s11 = scalar_lea.vmem %s0, 7
    %v12 = vld [vmem:[%s11] sm:$0x1]
    %13 = vrot.lane.b32.xlu0 %v12, 28
    %v14 = vpop.permute.xlu0 %13
    %vm15 = vcmask 261344
    %16 = vst.msk [vmem:[#allocation0] sm:$0x1] %vm15, %v14
    %s17 = scalar_lea.vmem %s0, 6
    %v18 = vld [vmem:[%s17] sm:$0x1]
    %19 = vrot.lane.b32.xlu0 %v18, 24
    %v20 = vpop.permute.xlu0 %19
    %vm21 = vcmask 228544
    %22 = vst.msk [vmem:[#allocation0] sm:$0x1] %vm21, %v20
    %s23 = scalar_lea.vmem %s0, 5
    %v24 = vld [vmem:[%s23] sm:$0x1]
    %25 = vrot.lane.b32.xlu0 %v24, 20
    %v26 = vpop.permute.xlu0 %25
    %vm27 = vcmask 195744
    %28 = vst.msk [vmem:[#allocation0] sm:$0x1] %vm27, %v26
    %s29 = scalar_lea.vmem %s0, 4
    %v30 = vld [vmem:[%s29] sm:$0x1]
    %31 = vrot.lane.b32.xlu0 %v30, 16
    %v32 = vpop.permute.xlu0 %31
    %vm33 = vcmask 162944
    %34 = vst.msk [vmem:[#allocation0] sm:$0x1] %vm33, %v32
    %s35 = scalar_lea.vmem %s0, 3
    %v36 = vld [vmem:[%s35] sm:$0x1]
    %37 = vrot.lane.b32.xlu0 %v36, 12
    %v38 = vpop.permute.xlu0 %37
    %vm39 = vcmask 130144
    %40 = vst.msk [vmem:[#allocation0] sm:$0x1] %vm39, %v38
    %s41 = scalar_lea.vmem %s0, 2
    %v42 = vld [vmem:[%s41] sm:$0x1]
    %43 = vrot.lane.b32.xlu0 %v42, 8
    %v44 = vpop.permute.xlu0 %43
    %vm45 = vcmask 97344
    %46 = vst.msk [vmem:[#allocation0] sm:$0x1] %vm45, %v44
    %s47 = scalar_lea.vmem %s0, 1
    %v48 = vld [vmem:[%s47] sm:$0x1]
    %49 = vrot.lane.b32.xlu0 %v48, 4
    %v50 = vpop.permute.xlu0 %49
    %vm51 = vcmask 64544
    %52 = vst.msk [vmem:[#allocation0] sm:$0x1] %vm51, %v50
    %s54 = sshllo.u32 0, 1
    %v56 = vld [vmem:[#allocation0] sm:%s54]
    %s57 = sshllo.u32 0, 1
    %58 = vst [vmem:[%s1] sm:%s57] %v56

// kernel: tile.28
$region0: #{tile.28}
  #allocation0 [shape = 's32[1]{0}', space=sflag, size = 0x4, scoped, tag = 'scoped memory for tile.28']
  %s0 = inlined_call_operand.vmem [shape: f32[128], index: 0, kind: input, shape index: {}]
  %s1 = inlined_call_operand.vmem [shape: f32[4,128], index: 1, kind: output, shape index: {}]
  // Predicated region
  $region2: #{tile.28} parent=0 // pred_check
    _
  $region3: #{tile.28} parent=0 // pred_check_branch
    %3 = sbr.rel (0) target = $region5
  $region4: #{tile.28} parent=0 // pred_region
    _
  $region5: #{tile.28} parent=0 // pred_fallthru
    _
  %v4 = vld [vmem:[%s0] ss:$0 sm:$0xff]
  %5 = vst [vmem:[%s1] sm:$0xf] %v4

// kernel: tile.33
$region0: #{tile.33}
  #allocation0 [shape = 's32[1]{0}', space=sflag, size = 0x4, scoped, tag = 'scoped memory for tile.33']
  %s0 = inlined_call_operand.vmem [shape: f32[8], index: 0, kind: input, shape index: {}]
  %s1 = inlined_call_operand.vmem [shape: f32[4,8], index: 1, kind: output, shape index: {}]
  // Predicated region
  $region2: #{tile.33} parent=0 // pred_check
    _
  $region3: #{tile.33} parent=0 // pred_check_branch
    %3 = sbr.rel (0) target = $region5
  $region4: #{tile.33} parent=0 // pred_region
    _
  $region5: #{tile.33} parent=0 // pred_fallthru
    _
  %v4 = vld [vmem:[%s0] ss:$0 sm:$0xff]
  %5 = vst [vmem:[%s1] sm:$0xf] %v4

// kernel: tile.34
$region0: #{tile.34}
  %s0 = inlined_call_operand.vmem [shape: f32[4,8], index: 0, kind: input, shape index: {}]
  %s1 = inlined_call_operand.vmem [shape: f32[32], index: 1, kind: output, shape index: {}]
  $region1: #{tile.34} parent=0
    #allocation0 [shape = 'u8[4096]{0}', space=vmem, size = 0x1000, scoped, tag = 'scoped mem for output reshape']
    #allocation1 [shape = 'u8[4096]{0}', space=vmem, size = 0x1000, scoped, tag = 'scoped mem for input reshape']
    %s3 = sshllo.u32 0, 4
    %v4 = vld [vmem:[%s0] sm:%s3]
    %5 = vst [vmem:[#allocation1] sm:%s3] %v4
    %v6 = vld [vmem:[#allocation1] sm:$0x1]
    %vm7 = vcmask 64512
    %8 = vst.msk [vmem:[#allocation0] sm:$0x1] %vm7, %v6
    %s9 = scalar_lea.vmem [#allocation1], 3
    %v10 = vld [vmem:[%s9] sm:$0x1]
    %11 = vrot.lane.b32.xlu0 %v10, 24
    %v12 = vpop.permute.xlu0 %11
    %vm13 = vcmask 261312
    %14 = vst.msk [vmem:[#allocation0] sm:$0x1] %vm13, %v12
    %s15 = scalar_lea.vmem [#allocation1], 2
    %v16 = vld [vmem:[%s15] sm:$0x1]
    %17 = vrot.lane.b32.xlu0 %v16, 16
    %v18 = vpop.permute.xlu0 %17
    %vm19 = vcmask 195712
    %20 = vst.msk [vmem:[#allocation0] sm:$0x1] %vm19, %v18
    %s21 = scalar_lea.vmem [#allocation1], 1
    %v22 = vld [vmem:[%s21] sm:$0x1]
    %23 = vrot.lane.b32.xlu0 %v22, 8
    %v24 = vpop.permute.xlu0 %23
    %vm25 = vcmask 130112
    %26 = vst.msk [vmem:[#allocation0] sm:$0x1] %vm25, %v24
    %s28 = sshllo.u32 0, 1
    %v30 = vld [vmem:[#allocation0] sm:%s28]
    %s31 = sshllo.u32 0, 1
    %32 = vst [vmem:[%s1] sm:%s31] %v30

// kernel: simplenet_forward.1
$region0: #{simplenet_forward.1}
  #allocation0 [shape = 'u32[]', space=smem, size = 0x4, offset = 0x4, fixed_abs, tag = 'smem constant byte address 0x4 - core index']
  #allocation1 [shape = 'u32[144,128]{1,0:T(1,128)}', space=vmem, size = 0x12000, scoped, tag = 'internal scratch']
  %s0 = inlined_call_operand.vmem [shape: f32[8,432], index: 0, kind: input, shape index: {}]
  %s1 = inlined_call_operand.vmem [shape: f32[432,512], index: 1, kind: input, shape index: {}]
  %s2 = inlined_call_operand.vmem [shape: f32[1,512], index: 2, kind: input, shape index: {}]
  %s3 = inlined_call_operand.vmem [shape: f32[128,512], index: 3, kind: input, shape index: {}]
  %s4 = inlined_call_operand.vmem [shape: f32[1,512], index: 4, kind: input, shape index: {}]
  %s5 = inlined_call_operand.vmem [shape: f32[128,2], index: 5, kind: input, shape index: {}]
  %s6 = inlined_call_operand.vmem [shape: f32[1,2], index: 6, kind: input, shape index: {}]
  %s7 = inlined_call_operand.vmem [shape: f32[8,2], index: 7, kind: output, shape index: {}]
  %s8 = sld [smem:[#allocation0]]
  $region38: #{simplenet_forward.1} parent=0
    _
  %s10 = ssub.s32 1, %s8
  %s11 = scalar_select 0, %s10, %s8
  // Predicated region
  $region2: #{simplenet_forward.1} parent=0 // pred_check
    _
  $region3: #{simplenet_forward.1} parent=0 // pred_check_branch
    %13 = sbr.rel (0) target = $region5
  $region4: #{simplenet_forward.1} parent=0 // pred_region
    _
  $region5: #{simplenet_forward.1} parent=0 // pred_fallthru
    _
  // Predicated region
  $region6: #{simplenet_forward.1} parent=0 // pred_check
    _
  $region7: #{simplenet_forward.1} parent=0 // pred_check_branch
    %15 = sbr.rel (0) target = $region9
  $region8: #{simplenet_forward.1} parent=0 // pred_region
    _
  $region9: #{simplenet_forward.1} parent=0 // pred_fallthru
    _
  // Predicated region
  $region10: #{simplenet_forward.1} parent=0 // pred_check
    _
  $region11: #{simplenet_forward.1} parent=0 // pred_check_branch
    %17 = sbr.rel (0) target = $region13
  $region12: #{simplenet_forward.1} parent=0 // pred_region
    _
  $region13: #{simplenet_forward.1} parent=0 // pred_fallthru
    _
  // Predicated region
  $region14: #{simplenet_forward.1} parent=0 // pred_check
    _
  $region15: #{simplenet_forward.1} parent=0 // pred_check_branch
    %19 = sbr.rel (0) target = $region17
  $region16: #{simplenet_forward.1} parent=0 // pred_region
    _
  $region17: #{simplenet_forward.1} parent=0 // pred_fallthru
    _
  // Predicated region
  $region18: #{simplenet_forward.1} parent=0 // pred_check
    _
  $region19: #{simplenet_forward.1} parent=0 // pred_check_branch
    %21 = sbr.rel (0) target = $region21
  $region20: #{simplenet_forward.1} parent=0 // pred_region
    _
  $region21: #{simplenet_forward.1} parent=0 // pred_fallthru
    _
  // Predicated region
  $region22: #{simplenet_forward.1} parent=0 // pred_check
    _
  $region23: #{simplenet_forward.1} parent=0 // pred_check_branch
    %23 = sbr.rel (0) target = $region25
  $region24: #{simplenet_forward.1} parent=0 // pred_region
    _
  $region25: #{simplenet_forward.1} parent=0 // pred_fallthru
    _
  // Predicated region
  $region26: #{simplenet_forward.1} parent=0 // pred_check
    _
  $region27: #{simplenet_forward.1} parent=0 // pred_check_branch
    %25 = sbr.rel (0) target = $region29
  $region28: #{simplenet_forward.1} parent=0 // pred_region
    _
  $region29: #{simplenet_forward.1} parent=0 // pred_fallthru
    _
  %v26 = vld [vmem:[%s0] sm:$0xff]
  %v27 = vld [vmem:[%s0 + $0x8] sm:$0xff]
  %v28 = vld [vmem:[%s0 + $0x10] sm:$0xff]
  %v29 = vld [vmem:[%s0 + $0x18] sm:$0xff]
  %v30 = vld [vmem:[%s1] sm:$0xff]
  %v31 = vld [vmem:[%s1 + $0x8] sm:$0xff]
  %v32 = vld [vmem:[%s1 + $0x10] sm:$0xff]
  %v33 = vld [vmem:[%s1 + $0x18] sm:$0xff]
  %v34 = vld [vmem:[%s1 + $0x20] sm:$0xff]
  %v35 = vld [vmem:[%s1 + $0x28] sm:$0xff]
  %v36 = vld [vmem:[%s1 + $0x30] sm:$0xff]
  %v37 = vld [vmem:[%s1 + $0x38] sm:$0xff]
  %v38 = vld [vmem:[%s1 + $0x40] sm:$0xff]
  %v39 = vld [vmem:[%s1 + $0x48] sm:$0xff]
  %v40 = vld [vmem:[%s1 + $0x50] sm:$0xff]
  %v41 = vld [vmem:[%s1 + $0x58] sm:$0xff]
  %v42 = vld [vmem:[%s1 + $0x60] sm:$0xff]
  %v43 = vld [vmem:[%s1 + $0x68] sm:$0xff]
  %v44 = vld [vmem:[%s1 + $0x70] sm:$0xff]
  %v45 = vld [vmem:[%s1 + $0x78] sm:$0xff]
  %v46 = vld [vmem:[%s1 + $0x80] sm:$0xff]
  %v47 = vld [vmem:[%s1 + $0x88] sm:$0xff]
  %v48 = vld [vmem:[%s1 + $0x90] sm:$0xff]
  %v49 = vld [vmem:[%s1 + $0x98] sm:$0xff]
  %v50 = vld [vmem:[%s1 + $0xa0] sm:$0xff]
  %v51 = vld [vmem:[%s1 + $0xa8] sm:$0xff]
  %v52 = vld [vmem:[%s1 + $0xb0] sm:$0xff]
  %v53 = vld [vmem:[%s1 + $0xb8] sm:$0xff]
  %v54 = vld [vmem:[%s1 + $0xc0] sm:$0xff]
  %v55 = vld [vmem:[%s1 + $0xc8] sm:$0xff]
  %v56 = vld [vmem:[%s1 + $0xd0] sm:$0xff]
  %v57 = vld [vmem:[%s1 + $0xd8] sm:$0xff]
  %v58 = vld [vmem:[%s1 + $0xe0] sm:$0xff]
  %v59 = vld [vmem:[%s1 + $0xe8] sm:$0xff]
  %v60 = vld [vmem:[%s1 + $0xf0] sm:$0xff]
  %v61 = vld [vmem:[%s1 + $0xf8] sm:$0xff]
  %v62 = vld [vmem:[%s1 + $0x100] sm:$0xff]
  %v63 = vld [vmem:[%s1 + $0x108] sm:$0xff]
  %v64 = vld [vmem:[%s1 + $0x110] sm:$0xff]
  %v65 = vld [vmem:[%s1 + $0x118] sm:$0xff]
  %v66 = vld [vmem:[%s1 + $0x120] sm:$0xff]
  %v67 = vld [vmem:[%s1 + $0x128] sm:$0xff]
  %v68 = vld [vmem:[%s1 + $0x130] sm:$0xff]
  %v69 = vld [vmem:[%s1 + $0x138] sm:$0xff]
  %v70 = vld [vmem:[%s1 + $0x140] sm:$0xff]
  %v71 = vld [vmem:[%s1 + $0x148] sm:$0xff]
  %v72 = vld [vmem:[%s1 + $0x150] sm:$0xff]
  %v73 = vld [vmem:[%s1 + $0x158] sm:$0xff]
  %v74 = vld [vmem:[%s1 + $0x160] sm:$0xff]
  %v75 = vld [vmem:[%s1 + $0x168] sm:$0xff]
  %v76 = vld [vmem:[%s1 + $0x170] sm:$0xff]
  %v77 = vld [vmem:[%s1 + $0x178] sm:$0xff]
  %v78 = vld [vmem:[%s1 + $0x180] sm:$0xff]
  %v79 = vld [vmem:[%s1 + $0x188] sm:$0xff]
  %v80 = vld [vmem:[%s1 + $0x190] sm:$0xff]
  %v81 = vld [vmem:[%s1 + $0x198] sm:$0xff]
  %v82 = vld [vmem:[%s1 + $0x1a0] sm:$0xff]
  %v83 = vld [vmem:[%s1 + $0x1a8] sm:$0xff]
  %v84 = vld [vmem:[%s1 + $0x1b0] sm:$0xff]
  %v85 = vld [vmem:[%s1 + $0x1b8] sm:$0xff]
  %v86 = vld [vmem:[%s1 + $0x1c0] sm:$0xff]
  %v87 = vld [vmem:[%s1 + $0x1c8] sm:$0xff]
  %v88 = vld [vmem:[%s1 + $0x1d0] sm:$0xff]
  %v89 = vld [vmem:[%s1 + $0x1d8] sm:$0xff]
  %v90 = vld [vmem:[%s1 + $0x1e0] sm:$0xff]
  %v91 = vld [vmem:[%s1 + $0x1e8] sm:$0xff]
  %v92 = vld [vmem:[%s1 + $0x1f0] sm:$0xff]
  %v93 = vld [vmem:[%s1 + $0x1f8] sm:$0xff]
  %v94 = vld [vmem:[%s1 + $0x200] sm:$0xff]
  %v95 = vld [vmem:[%s1 + $0x208] sm:$0xff]
  %v96 = vld [vmem:[%s1 + $0x210] sm:$0xff]
  %v97 = vld [vmem:[%s1 + $0x218] sm:$0xff]
  %v98 = vld [vmem:[%s1 + $0x220] sm:$0xff]
  %v99 = vld [vmem:[%s1 + $0x228] sm:$0xff]
  %v100 = vld [vmem:[%s1 + $0x230] sm:$0xff]
  %v101 = vld [vmem:[%s1 + $0x238] sm:$0xff]
  %v102 = vld [vmem:[%s1 + $0x240] sm:$0xff]
  %v103 = vld [vmem:[%s1 + $0x248] sm:$0xff]
  %v104 = vld [vmem:[%s1 + $0x250] sm:$0xff]
  %v105 = vld [vmem:[%s1 + $0x258] sm:$0xff]
  %v106 = vld [vmem:[%s1 + $0x260] sm:$0xff]
  %v107 = vld [vmem:[%s1 + $0x268] sm:$0xff]
  %v108 = vld [vmem:[%s1 + $0x270] sm:$0xff]
  %v109 = vld [vmem:[%s1 + $0x278] sm:$0xff]
  %v110 = vld [vmem:[%s1 + $0x280] sm:$0xff]
  %v111 = vld [vmem:[%s1 + $0x288] sm:$0xff]
  %v112 = vld [vmem:[%s1 + $0x290] sm:$0xff]
  %v113 = vld [vmem:[%s1 + $0x298] sm:$0xff]
  %v114 = vld [vmem:[%s1 + $0x2a0] sm:$0xff]
  %v115 = vld [vmem:[%s1 + $0x2a8] sm:$0xff]
  %v116 = vld [vmem:[%s1 + $0x2b0] sm:$0xff]
  %v117 = vld [vmem:[%s1 + $0x2b8] sm:$0xff]
  %v118 = vld [vmem:[%s1 + $0x2c0] sm:$0xff]
  %v119 = vld [vmem:[%s1 + $0x2c8] sm:$0xff]
  %v120 = vld [vmem:[%s1 + $0x2d0] sm:$0xff]
  %v121 = vld [vmem:[%s1 + $0x2d8] sm:$0xff]
  %v122 = vld [vmem:[%s1 + $0x2e0] sm:$0xff]
  %v123 = vld [vmem:[%s1 + $0x2e8] sm:$0xff]
  %v124 = vld [vmem:[%s1 + $0x2f0] sm:$0xff]
  %v125 = vld [vmem:[%s1 + $0x2f8] sm:$0xff]
  %v126 = vld [vmem:[%s1 + $0x300] sm:$0xff]
  %v127 = vld [vmem:[%s1 + $0x308] sm:$0xff]
  %v128 = vld [vmem:[%s1 + $0x310] sm:$0xff]
  %v129 = vld [vmem:[%s1 + $0x318] sm:$0xff]
  %v130 = vld [vmem:[%s1 + $0x320] sm:$0xff]
  %v131 = vld [vmem:[%s1 + $0x328] sm:$0xff]
  %v132 = vld [vmem:[%s1 + $0x330] sm:$0xff]
  %v133 = vld [vmem:[%s1 + $0x338] sm:$0xff]
  %v134 = vld [vmem:[%s1 + $0x340] sm:$0xff]
  %v135 = vld [vmem:[%s1 + $0x348] sm:$0xff]
  %v136 = vld [vmem:[%s1 + $0x350] sm:$0xff]
  %v137 = vld [vmem:[%s1 + $0x358] sm:$0xff]
  %v138 = vld [vmem:[%s1 + $0x360] sm:$0xff]
  %v139 = vld [vmem:[%s1 + $0x368] sm:$0xff]
  %v140 = vld [vmem:[%s1 + $0x370] sm:$0xff]
  %v141 = vld [vmem:[%s1 + $0x378] sm:$0xff]
  %v142 = vld [vmem:[%s1 + $0x380] sm:$0xff]
  %v143 = vld [vmem:[%s1 + $0x388] sm:$0xff]
  %v144 = vld [vmem:[%s1 + $0x390] sm:$0xff]
  %v145 = vld [vmem:[%s1 + $0x398] sm:$0xff]
  %v146 = vld [vmem:[%s1 + $0x3a0] sm:$0xff]
  %v147 = vld [vmem:[%s1 + $0x3a8] sm:$0xff]
  %v148 = vld [vmem:[%s1 + $0x3b0] sm:$0xff]
  %v149 = vld [vmem:[%s1 + $0x3b8] sm:$0xff]
  %v150 = vld [vmem:[%s1 + $0x3c0] sm:$0xff]
  %v151 = vld [vmem:[%s1 + $0x3c8] sm:$0xff]
  %v152 = vld [vmem:[%s1 + $0x3d0] sm:$0xff]
  %v153 = vld [vmem:[%s1 + $0x3d8] sm:$0xff]
  %v154 = vld [vmem:[%s1 + $0x3e0] sm:$0xff]
  %v155 = vld [vmem:[%s1 + $0x3e8] sm:$0xff]
  %v156 = vld [vmem:[%s1 + $0x3f0] sm:$0xff]
  %v157 = vld [vmem:[%s1 + $0x3f8] sm:$0xff]
  %v158 = vld [vmem:[%s1 + $0x400] sm:$0xff]
  %v159 = vld [vmem:[%s1 + $0x408] sm:$0xff]
  %v160 = vld [vmem:[%s1 + $0x410] sm:$0xff]
  %v161 = vld [vmem:[%s1 + $0x418] sm:$0xff]
  %v162 = vld [vmem:[%s1 + $0x420] sm:$0xff]
  %v163 = vld [vmem:[%s1 + $0x428] sm:$0xff]
  %v164 = vld [vmem:[%s1 + $0x430] sm:$0xff]
  %v165 = vld [vmem:[%s1 + $0x438] sm:$0xff]
  %v166 = vld [vmem:[%s1 + $0x440] sm:$0xff]
  %v167 = vld [vmem:[%s1 + $0x448] sm:$0xff]
  %v168 = vld [vmem:[%s1 + $0x450] sm:$0xff]
  %v169 = vld [vmem:[%s1 + $0x458] sm:$0xff]
  %v170 = vld [vmem:[%s1 + $0x460] sm:$0xff]
  %v171 = vld [vmem:[%s1 + $0x468] sm:$0xff]
  %v172 = vld [vmem:[%s1 + $0x470] sm:$0xff]
  %v173 = vld [vmem:[%s1 + $0x478] sm:$0xff]
  %v174 = vld [vmem:[%s1 + $0x480] sm:$0xff]
  %v175 = vld [vmem:[%s1 + $0x488] sm:$0xff]
  %v176 = vld [vmem:[%s1 + $0x490] sm:$0xff]
  %v177 = vld [vmem:[%s1 + $0x498] sm:$0xff]
  %v178 = vld [vmem:[%s1 + $0x4a0] sm:$0xff]
  %v179 = vld [vmem:[%s1 + $0x4a8] sm:$0xff]
  %v180 = vld [vmem:[%s1 + $0x4b0] sm:$0xff]
  %v181 = vld [vmem:[%s1 + $0x4b8] sm:$0xff]
  %v182 = vld [vmem:[%s1 + $0x4c0] sm:$0xff]
  %v183 = vld [vmem:[%s1 + $0x4c8] sm:$0xff]
  %v184 = vld [vmem:[%s1 + $0x4d0] sm:$0xff]
  %v185 = vld [vmem:[%s1 + $0x4d8] sm:$0xff]
  %v186 = vld [vmem:[%s1 + $0x4e0] sm:$0xff]
  %v187 = vld [vmem:[%s1 + $0x4e8] sm:$0xff]
  %v188 = vld [vmem:[%s1 + $0x4f0] sm:$0xff]
  %v189 = vld [vmem:[%s1 + $0x4f8] sm:$0xff]
  %v190 = vld [vmem:[%s1 + $0x500] sm:$0xff]
  %v191 = vld [vmem:[%s1 + $0x508] sm:$0xff]
  %v192 = vld [vmem:[%s1 + $0x510] sm:$0xff]
  %v193 = vld [vmem:[%s1 + $0x518] sm:$0xff]
  %v194 = vld [vmem:[%s1 + $0x520] sm:$0xff]
  %v195 = vld [vmem:[%s1 + $0x528] sm:$0xff]
  %v196 = vld [vmem:[%s1 + $0x530] sm:$0xff]
  %v197 = vld [vmem:[%s1 + $0x538] sm:$0xff]
  %v198 = vld [vmem:[%s1 + $0x540] sm:$0xff]
  %v199 = vld [vmem:[%s1 + $0x548] sm:$0xff]
  %v200 = vld [vmem:[%s1 + $0x550] sm:$0xff]
  %v201 = vld [vmem:[%s1 + $0x558] sm:$0xff]
  %v202 = vld [vmem:[%s1 + $0x560] sm:$0xff]
  %v203 = vld [vmem:[%s1 + $0x568] sm:$0xff]
  %v204 = vld [vmem:[%s1 + $0x570] sm:$0xff]
  %v205 = vld [vmem:[%s1 + $0x578] sm:$0xff]
  %v206 = vld [vmem:[%s1 + $0x580] sm:$0xff]
  %v207 = vld [vmem:[%s1 + $0x588] sm:$0xff]
  %v208 = vld [vmem:[%s1 + $0x590] sm:$0xff]
  %v209 = vld [vmem:[%s1 + $0x598] sm:$0xff]
  %v210 = vld [vmem:[%s1 + $0x5a0] sm:$0xff]
  %v211 = vld [vmem:[%s1 + $0x5a8] sm:$0xff]
  %v212 = vld [vmem:[%s1 + $0x5b0] sm:$0xff]
  %v213 = vld [vmem:[%s1 + $0x5b8] sm:$0xff]
  %v214 = vld [vmem:[%s1 + $0x5c0] sm:$0xff]
  %v215 = vld [vmem:[%s1 + $0x5c8] sm:$0xff]
  %v216 = vld [vmem:[%s1 + $0x5d0] sm:$0xff]
  %v217 = vld [vmem:[%s1 + $0x5d8] sm:$0xff]
  %v218 = vld [vmem:[%s1 + $0x5e0] sm:$0xff]
  %v219 = vld [vmem:[%s1 + $0x5e8] sm:$0xff]
  %v220 = vld [vmem:[%s1 + $0x5f0] sm:$0xff]
  %v221 = vld [vmem:[%s1 + $0x5f8] sm:$0xff]
  %v222 = vld [vmem:[%s1 + $0x600] sm:$0xff]
  %v223 = vld [vmem:[%s1 + $0x608] sm:$0xff]
  %v224 = vld [vmem:[%s1 + $0x610] sm:$0xff]
  %v225 = vld [vmem:[%s1 + $0x618] sm:$0xff]
  %v226 = vld [vmem:[%s1 + $0x620] sm:$0xff]
  %v227 = vld [vmem:[%s1 + $0x628] sm:$0xff]
  %v228 = vld [vmem:[%s1 + $0x630] sm:$0xff]
  %v229 = vld [vmem:[%s1 + $0x638] sm:$0xff]
  %v230 = vld [vmem:[%s1 + $0x640] sm:$0xff]
  %v231 = vld [vmem:[%s1 + $0x648] sm:$0xff]
  %v232 = vld [vmem:[%s1 + $0x650] sm:$0xff]
  %v233 = vld [vmem:[%s1 + $0x658] sm:$0xff]
  %v234 = vld [vmem:[%s1 + $0x660] sm:$0xff]
  %v235 = vld [vmem:[%s1 + $0x668] sm:$0xff]
  %v236 = vld [vmem:[%s1 + $0x670] sm:$0xff]
  %v237 = vld [vmem:[%s1 + $0x678] sm:$0xff]
  %v238 = vld [vmem:[%s1 + $0x680] sm:$0xff]
  %v239 = vld [vmem:[%s1 + $0x688] sm:$0xff]
  %v240 = vld [vmem:[%s1 + $0x690] sm:$0xff]
  %v241 = vld [vmem:[%s1 + $0x698] sm:$0xff]
  %v242 = vld [vmem:[%s1 + $0x6a0] sm:$0xff]
  %v243 = vld [vmem:[%s1 + $0x6a8] sm:$0xff]
  %v244 = vld [vmem:[%s1 + $0x6b0] sm:$0xff]
  %v245 = vld [vmem:[%s1 + $0x6b8] sm:$0xff]
  %v246 = vld [vmem:[%s2] sm:$0xf]
  %v248 = vlaneseq
  %v249 = vshrl.u32 %v248, 7
  %v250 = vsub.s32 0, %v249
  %v251 = vrot.slane %v246, %v250
  %v252 = vlaneseq
  %v253 = vshrl.u32 %v252, 7
  %v254 = vsub.s32 1, %v253
  %v255 = vrot.slane %v246, %v254
  %v256 = vlaneseq
  %v257 = vshrl.u32 %v256, 7
  %v258 = vsub.s32 2, %v257
  %v259 = vrot.slane %v246, %v258
  %v260 = vlaneseq
  %v261 = vshrl.u32 %v260, 7
  %v262 = vsub.s32 3, %v261
  %v263 = vrot.slane %v246, %v262
  %vm268 = vcmask 392192
  %v270 = vsel %vm268, %v29, 0
  %272 = vmatprep.subr.mxu0 %v31
  %273 = vmatpush1.msra.mxu0 %v30
  %274 = vmatprep.subr.mxu0 %v35
  %275 = vmatpush1.msra.mxu0 %v34
  %276 = vmatprep.subr.mxu0 %v39
  %277 = vmatpush1.msra.mxu0 %v38
  %278 = vmatprep.subr.mxu0 %v43
  %279 = vmatpush1.msra.mxu0 %v42
  %280 = vmatprep.subr.mxu0 %v47
  %281 = vmatpush1.msra.mxu0 %v46
  %282 = vmatprep.subr.mxu0 %v51
  %283 = vmatpush1.msra.mxu0 %v50
  %284 = vmatprep.subr.mxu0 %v55
  %285 = vmatpush1.msra.mxu0 %v54
  %286 = vmatprep.subr.mxu0 %v59
  %287 = vmatpush1.msra.mxu0 %v58
  %288 = vmatprep.subr.mxu0 %v63
  %289 = vmatpush1.msra.mxu0 %v62
  %290 = vmatprep.subr.mxu0 %v67
  %291 = vmatpush1.msra.mxu0 %v66
  %292 = vmatprep.subr.mxu0 %v71
  %293 = vmatpush1.msra.mxu0 %v70
  %294 = vmatprep.subr.mxu0 %v75
  %295 = vmatpush1.msra.mxu0 %v74
  %296 = vmatprep.subr.mxu0 %v79
  %297 = vmatpush1.msra.mxu0 %v78
  %298 = vmatprep.subr.mxu0 %v83
  %299 = vmatpush1.msra.mxu0 %v82
  %300 = vmatprep.subr.mxu0 %v87
  %301 = vmatpush1.msra.mxu0 %v86
  %302 = vmatprep.subr.mxu0 %v91
  %303 = vmatpush1.msra.mxu0 %v90
  %304 = vmatprep.subr.mxu0 %v95
  %305 = vmatpush1.msra.mxu0 %v94
  %306 = vmatprep.subr.mxu0 %v99
  %307 = vmatpush1.msra.mxu0 %v98
  %308 = vmatprep.subr.mxu0 %v103
  %309 = vmatpush1.msra.mxu0 %v102
  %310 = vmatprep.subr.mxu0 %v107
  %311 = vmatpush1.msra.mxu0 %v106
  %312 = vmatprep.subr.mxu0 %v111
  %313 = vmatpush1.msra.mxu0 %v110
  %314 = vmatprep.subr.mxu0 %v115
  %315 = vmatpush1.msra.mxu0 %v114
  %316 = vmatprep.subr.mxu0 %v119
  %317 = vmatpush1.msra.mxu0 %v118
  %318 = vmatprep.subr.mxu0 %v123
  %319 = vmatpush1.msra.mxu0 %v122
  %320 = vmatprep.subr.mxu0 %v127
  %321 = vmatpush1.msra.mxu0 %v126
  %322 = vmatprep.subr.mxu0 %v131
  %323 = vmatpush1.msra.mxu0 %v130
  %324 = vmatprep.subr.mxu0 %v135
  %325 = vmatpush1.msra.mxu0 %v134
  %326 = vmatprep.subr.mxu0 %v139
  %327 = vmatpush1.msra.mxu0 %v138
  %328 = vmatprep.subr.mxu0 %v143
  %329 = vmatpush1.msra.mxu0 %v142
  %330 = vmatprep.subr.mxu0 %v147
  %331 = vmatpush1.msra.mxu0 %v146
  %332 = vmatprep.subr.mxu0 %v151
  %333 = vmatpush1.msra.mxu0 %v150
  %334 = vmatprep.subr.mxu0 %v155
  %335 = vmatpush1.msra.mxu0 %v154
  %336 = vmatprep.mubr.f32.mxu0 %v27
  %337 = vmatmul.mubr.f32.gmra.mrb[0].mxu0 %v26
  %v338 = vpop.f32.mrb[0].mxu0
  %v339 = vadd.f32 %v251, %v338
  %v340 = vpop.f32.mrb[0].mxu0
  %v341 = vadd.f32 %v255, %v340
  %342 = vdwg.mxu0
  %343 = vmatprep.subr.mxu0 %v159
  %344 = vmatpush1.msra.mxu0 %v158
  %345 = vmatprep.subr.mxu0 %v163
  %346 = vmatpush1.msra.mxu0 %v162
  %347 = vmatprep.subr.mxu0 %v167
  %348 = vmatpush1.msra.mxu0 %v166
  %349 = vmatprep.subr.mxu0 %v171
  %350 = vmatpush1.msra.mxu0 %v170
  %351 = vmatprep.subr.mxu0 %v175
  %352 = vmatpush1.msra.mxu0 %v174
  %353 = vmatprep.subr.mxu0 %v179
  %354 = vmatpush1.msra.mxu0 %v178
  %355 = vmatprep.subr.mxu0 %v183
  %356 = vmatpush1.msra.mxu0 %v182
  %357 = vmatprep.subr.mxu0 %v187
  %358 = vmatpush1.msra.mxu0 %v186
  %359 = vmatprep.subr.mxu0 %v191
  %360 = vmatpush1.msra.mxu0 %v190
  %361 = vmatprep.subr.mxu0 %v195
  %362 = vmatpush1.msra.mxu0 %v194
  %363 = vmatprep.subr.mxu0 %v199
  %364 = vmatpush1.msra.mxu0 %v198
  %365 = vmatprep.subr.mxu0 %v203
  %366 = vmatpush1.msra.mxu0 %v202
  %367 = vmatprep.subr.mxu0 %v207
  %368 = vmatpush1.msra.mxu0 %v206
  %369 = vmatprep.subr.mxu0 %v211
  %370 = vmatpush1.msra.mxu0 %v210
  %371 = vmatprep.subr.mxu0 %v215
  %372 = vmatpush1.msra.mxu0 %v214
  %373 = vmatprep.subr.mxu0 %v219
  %374 = vmatpush1.msra.mxu0 %v218
  %375 = vmatprep.subr.mxu0 %v223
  %376 = vmatpush1.msra.mxu0 %v222
  %377 = vmatprep.subr.mxu0 %v227
  %378 = vmatpush1.msra.mxu0 %v226
  %379 = vmatprep.subr.mxu0 %v231
  %380 = vmatpush1.msra.mxu0 %v230
  %381 = vmatprep.subr.mxu0 %v235
  %382 = vmatpush1.msra.mxu0 %v234
  %383 = vmatprep.subr.mxu0 %v239
  %384 = vmatpush1.msra.mxu0 %v238
  %385 = vmatprep.subr.mxu0 %v243
  %386 = vmatpush1.msra.mxu0 %v242
  %387 = vmatprep.subr.mxu0 0.0
  %388 = vmatpush1.msra.mxu0 0.0
  %389 = vmatprep.subr.mxu0 0.0
  %390 = vmatpush1.msra.mxu0 0.0
  %391 = vmatprep.subr.mxu0 0.0
  %392 = vmatpush1.msra.mxu0 0.0
  %393 = vmatprep.subr.mxu0 0.0
  %394 = vmatpush1.msra.mxu0 0.0
  %395 = vmatprep.subr.mxu0 0.0
  %396 = vmatpush1.msra.mxu0 0.0
  %397 = vmatprep.subr.mxu0 0.0
  %398 = vmatpush1.msra.mxu0 0.0
  %399 = vmatprep.subr.mxu0 0.0
  %400 = vmatpush1.msra.mxu0 0.0
  %401 = vmatprep.subr.mxu0 0.0
  %402 = vmatpush1.msra.mxu0 0.0
  %403 = vmatprep.subr.mxu0 0.0
  %404 = vmatpush1.msra.mxu0 0.0
  %405 = vmatprep.subr.mxu0 0.0
  %406 = vmatpush1.msra.mxu0 0.0
  %407 = vmatprep.mubr.f32.mxu0 %v270
  %408 = vmatmul.mubr.f32.gmra.mrb[0].mxu0 %v28
  %v409 = vpop.f32.mrb[0].mxu0
  %v410 = vadd.f32 %v339, %v409
  %v411 = vpop.f32.mrb[0].mxu0
  %v412 = vadd.f32 %v341, %v411
  %413 = vdwg.mxu0
  %414 = vmatprep.subr.mxu0 %v33
  %415 = vmatpush1.msra.mxu0 %v32
  %416 = vmatprep.subr.mxu0 %v37
  %417 = vmatpush1.msra.mxu0 %v36
  %418 = vmatprep.subr.mxu0 %v41
  %419 = vmatpush1.msra.mxu0 %v40
  %420 = vmatprep.subr.mxu0 %v45
  %421 = vmatpush1.msra.mxu0 %v44
  %422 = vmatprep.subr.mxu0 %v49
  %423 = vmatpush1.msra.mxu0 %v48
  %424 = vmatprep.subr.mxu0 %v53
  %425 = vmatpush1.msra.mxu0 %v52
  %426 = vmatprep.subr.mxu0 %v57
  %427 = vmatpush1.msra.mxu0 %v56
  %428 = vmatprep.subr.mxu0 %v61
  %429 = vmatpush1.msra.mxu0 %v60
  %430 = vmatprep.subr.mxu0 %v65
  %431 = vmatpush1.msra.mxu0 %v64
  %432 = vmatprep.subr.mxu0 %v69
  %433 = vmatpush1.msra.mxu0 %v68
  %434 = vmatprep.subr.mxu0 %v73
  %435 = vmatpush1.msra.mxu0 %v72
  %436 = vmatprep.subr.mxu0 %v77
  %437 = vmatpush1.msra.mxu0 %v76
  %438 = vmatprep.subr.mxu0 %v81
  %439 = vmatpush1.msra.mxu0 %v80
  %440 = vmatprep.subr.mxu0 %v85
  %441 = vmatpush1.msra.mxu0 %v84
  %442 = vmatprep.subr.mxu0 %v89
  %443 = vmatpush1.msra.mxu0 %v88
  %444 = vmatprep.subr.mxu0 %v93
  %445 = vmatpush1.msra.mxu0 %v92
  %446 = vmatprep.subr.mxu0 %v97
  %447 = vmatpush1.msra.mxu0 %v96
  %448 = vmatprep.subr.mxu0 %v101
  %449 = vmatpush1.msra.mxu0 %v100
  %450 = vmatprep.subr.mxu0 %v105
  %451 = vmatpush1.msra.mxu0 %v104
  %452 = vmatprep.subr.mxu0 %v109
  %453 = vmatpush1.msra.mxu0 %v108
  %454 = vmatprep.subr.mxu0 %v113
  %455 = vmatpush1.msra.mxu0 %v112
  %456 = vmatprep.subr.mxu0 %v117
  %457 = vmatpush1.msra.mxu0 %v116
  %458 = vmatprep.subr.mxu0 %v121
  %459 = vmatpush1.msra.mxu0 %v120
  %460 = vmatprep.subr.mxu0 %v125
  %461 = vmatpush1.msra.mxu0 %v124
  %462 = vmatprep.subr.mxu0 %v129
  %463 = vmatpush1.msra.mxu0 %v128
  %464 = vmatprep.subr.mxu0 %v133
  %465 = vmatpush1.msra.mxu0 %v132
  %466 = vmatprep.subr.mxu0 %v137
  %467 = vmatpush1.msra.mxu0 %v136
  %468 = vmatprep.subr.mxu0 %v141
  %469 = vmatpush1.msra.mxu0 %v140
  %470 = vmatprep.subr.mxu0 %v145
  %471 = vmatpush1.msra.mxu0 %v144
  %472 = vmatprep.subr.mxu0 %v149
  %473 = vmatpush1.msra.mxu0 %v148
  %474 = vmatprep.subr.mxu0 %v153
  %475 = vmatpush1.msra.mxu0 %v152
  %476 = vmatprep.subr.mxu0 %v157
  %477 = vmatpush1.msra.mxu0 %v156
  %478 = vmatprep.mubr.f32.mxu0 %v27
  %479 = vmatmul.mubr.f32.gmra.mrb[0].mxu0 %v26
  %v480 = vpop.f32.mrb[0].mxu0
  %v481 = vadd.f32 %v259, %v480
  %v482 = vpop.f32.mrb[0].mxu0
  %v483 = vadd.f32 %v263, %v482
  %484 = vdwg.mxu0
  %485 = vmatprep.subr.mxu0 %v161
  %486 = vmatpush1.msra.mxu0 %v160
  %487 = vmatprep.subr.mxu0 %v165
  %488 = vmatpush1.msra.mxu0 %v164
  %489 = vmatprep.subr.mxu0 %v169
  %490 = vmatpush1.msra.mxu0 %v168
  %491 = vmatprep.subr.mxu0 %v173
  %492 = vmatpush1.msra.mxu0 %v172
  %493 = vmatprep.subr.mxu0 %v177
  %494 = vmatpush1.msra.mxu0 %v176
  %495 = vmatprep.subr.mxu0 %v181
  %496 = vmatpush1.msra.mxu0 %v180
  %497 = vmatprep.subr.mxu0 %v185
  %498 = vmatpush1.msra.mxu0 %v184
  %499 = vmatprep.subr.mxu0 %v189
  %500 = vmatpush1.msra.mxu0 %v188
  %501 = vmatprep.subr.mxu0 %v193
  %502 = vmatpush1.msra.mxu0 %v192
  %503 = vmatprep.subr.mxu0 %v197
  %504 = vmatpush1.msra.mxu0 %v196
  %505 = vmatprep.subr.mxu0 %v201
  %506 = vmatpush1.msra.mxu0 %v200
  %507 = vmatprep.subr.mxu0 %v205
  %508 = vmatpush1.msra.mxu0 %v204
  %509 = vmatprep.subr.mxu0 %v209
  %510 = vmatpush1.msra.mxu0 %v208
  %511 = vmatprep.subr.mxu0 %v213
  %512 = vmatpush1.msra.mxu0 %v212
  %513 = vmatprep.subr.mxu0 %v217
  %514 = vmatpush1.msra.mxu0 %v216
  %515 = vmatprep.subr.mxu0 %v221
  %516 = vmatpush1.msra.mxu0 %v220
  %517 = vmatprep.subr.mxu0 %v225
  %518 = vmatpush1.msra.mxu0 %v224
  %519 = vmatprep.subr.mxu0 %v229
  %520 = vmatpush1.msra.mxu0 %v228
  %521 = vmatprep.subr.mxu0 %v233
  %522 = vmatpush1.msra.mxu0 %v232
  %523 = vmatprep.subr.mxu0 %v237
  %524 = vmatpush1.msra.mxu0 %v236
  %525 = vmatprep.subr.mxu0 %v241
  %526 = vmatpush1.msra.mxu0 %v240
  %527 = vmatprep.subr.mxu0 %v245
  %528 = vmatpush1.msra.mxu0 %v244
  %529 = vmatprep.subr.mxu0 0.0
  %530 = vmatpush1.msra.mxu0 0.0
  %531 = vmatprep.subr.mxu0 0.0
  %532 = vmatpush1.msra.mxu0 0.0
  %533 = vmatprep.subr.mxu0 0.0
  %534 = vmatpush1.msra.mxu0 0.0
  %535 = vmatprep.subr.mxu0 0.0
  %536 = vmatpush1.msra.mxu0 0.0
  %537 = vmatprep.subr.mxu0 0.0
  %538 = vmatpush1.msra.mxu0 0.0
  %539 = vmatprep.subr.mxu0 0.0
  %540 = vmatpush1.msra.mxu0 0.0
  %541 = vmatprep.subr.mxu0 0.0
  %542 = vmatpush1.msra.mxu0 0.0
  %543 = vmatprep.subr.mxu0 0.0
  %544 = vmatpush1.msra.mxu0 0.0
  %545 = vmatprep.subr.mxu0 0.0
  %546 = vmatpush1.msra.mxu0 0.0
  %547 = vmatprep.subr.mxu0 0.0
  %548 = vmatpush1.msra.mxu0 0.0
  %549 = vmatprep.mubr.f32.mxu0 %v270
  %550 = vmatmul.mubr.f32.gmra.mrb[0].mxu0 %v28
  %v551 = vpop.f32.mrb[0].mxu0
  %v552 = vadd.f32 %v481, %v551
  %v553 = vpop.f32.mrb[0].mxu0
  %v554 = vadd.f32 %v483, %v553
  %555 = vdwg.mxu0
  %v556 = vmax.f32 %v410, 0.0
  %v557 = vmax.f32 %v412, 0.0
  %v558 = vmax.f32 %v552, 0.0
  %v559 = vmax.f32 %v554, 0.0
  %v560 = vmax.f32 %v556, %v557
  %v561 = vmax.f32 %v558, %v559
  %v562 = vmax.f32 %v560, %v561
  %v563 = vld [vmem:[%s3] sm:$0xff]
  %v564 = vld [vmem:[%s3 + $0x8] sm:$0xff]
  %v565 = vld [vmem:[%s3 + $0x10] sm:$0xff]
  %v566 = vld [vmem:[%s3 + $0x18] sm:$0xff]
  %v567 = vld [vmem:[%s3 + $0x20] sm:$0xff]
  %v568 = vld [vmem:[%s3 + $0x28] sm:$0xff]
  %v569 = vld [vmem:[%s3 + $0x30] sm:$0xff]
  %v570 = vld [vmem:[%s3 + $0x38] sm:$0xff]
  %v571 = vld [vmem:[%s3 + $0x40] sm:$0xff]
  %v572 = vld [vmem:[%s3 + $0x48] sm:$0xff]
  %v573 = vld [vmem:[%s3 + $0x50] sm:$0xff]
  %v574 = vld [vmem:[%s3 + $0x58] sm:$0xff]
  %v575 = vld [vmem:[%s3 + $0x60] sm:$0xff]
  %v576 = vld [vmem:[%s3 + $0x68] sm:$0xff]
  %v577 = vld [vmem:[%s3 + $0x70] sm:$0xff]
  %v578 = vld [vmem:[%s3 + $0x78] sm:$0xff]
  %v579 = vld [vmem:[%s3 + $0x80] sm:$0xff]
  %v580 = vld [vmem:[%s3 + $0x88] sm:$0xff]
  %v581 = vld [vmem:[%s3 + $0x90] sm:$0xff]
  %v582 = vld [vmem:[%s3 + $0x98] sm:$0xff]
  %v583 = vld [vmem:[%s3 + $0xa0] sm:$0xff]
  %v584 = vld [vmem:[%s3 + $0xa8] sm:$0xff]
  %v585 = vld [vmem:[%s3 + $0xb0] sm:$0xff]
  %v586 = vld [vmem:[%s3 + $0xb8] sm:$0xff]
  %v587 = vld [vmem:[%s3 + $0xc0] sm:$0xff]
  %v588 = vld [vmem:[%s3 + $0xc8] sm:$0xff]
  %v589 = vld [vmem:[%s3 + $0xd0] sm:$0xff]
  %v590 = vld [vmem:[%s3 + $0xd8] sm:$0xff]
  %v591 = vld [vmem:[%s3 + $0xe0] sm:$0xff]
  %v592 = vld [vmem:[%s3 + $0xe8] sm:$0xff]
  %v593 = vld [vmem:[%s3 + $0xf0] sm:$0xff]
  %v594 = vld [vmem:[%s3 + $0xf8] sm:$0xff]
  %v595 = vld [vmem:[%s3 + $0x100] sm:$0xff]
  %v596 = vld [vmem:[%s3 + $0x108] sm:$0xff]
  %v597 = vld [vmem:[%s3 + $0x110] sm:$0xff]
  %v598 = vld [vmem:[%s3 + $0x118] sm:$0xff]
  %v599 = vld [vmem:[%s3 + $0x120] sm:$0xff]
  %v600 = vld [vmem:[%s3 + $0x128] sm:$0xff]
  %v601 = vld [vmem:[%s3 + $0x130] sm:$0xff]
  %v602 = vld [vmem:[%s3 + $0x138] sm:$0xff]
  %v603 = vld [vmem:[%s3 + $0x140] sm:$0xff]
  %v604 = vld [vmem:[%s3 + $0x148] sm:$0xff]
  %v605 = vld [vmem:[%s3 + $0x150] sm:$0xff]
  %v606 = vld [vmem:[%s3 + $0x158] sm:$0xff]
  %v607 = vld [vmem:[%s3 + $0x160] sm:$0xff]
  %v608 = vld [vmem:[%s3 + $0x168] sm:$0xff]
  %v609 = vld [vmem:[%s3 + $0x170] sm:$0xff]
  %v610 = vld [vmem:[%s3 + $0x178] sm:$0xff]
  %v611 = vld [vmem:[%s3 + $0x180] sm:$0xff]
  %v612 = vld [vmem:[%s3 + $0x188] sm:$0xff]
  %v613 = vld [vmem:[%s3 + $0x190] sm:$0xff]
  %v614 = vld [vmem:[%s3 + $0x198] sm:$0xff]
  %v615 = vld [vmem:[%s3 + $0x1a0] sm:$0xff]
  %v616 = vld [vmem:[%s3 + $0x1a8] sm:$0xff]
  %v617 = vld [vmem:[%s3 + $0x1b0] sm:$0xff]
  %v618 = vld [vmem:[%s3 + $0x1b8] sm:$0xff]
  %v619 = vld [vmem:[%s3 + $0x1c0] sm:$0xff]
  %v620 = vld [vmem:[%s3 + $0x1c8] sm:$0xff]
  %v621 = vld [vmem:[%s3 + $0x1d0] sm:$0xff]
  %v622 = vld [vmem:[%s3 + $0x1d8] sm:$0xff]
  %v623 = vld [vmem:[%s3 + $0x1e0] sm:$0xff]
  %v624 = vld [vmem:[%s3 + $0x1e8] sm:$0xff]
  %v625 = vld [vmem:[%s3 + $0x1f0] sm:$0xff]
  %v626 = vld [vmem:[%s3 + $0x1f8] sm:$0xff]
  %v627 = vld [vmem:[%s4] sm:$0xf]
  %v629 = vlaneseq
  %v630 = vshrl.u32 %v629, 7
  %v631 = vsub.s32 0, %v630
  %v632 = vrot.slane %v627, %v631
  %v633 = vlaneseq
  %v634 = vshrl.u32 %v633, 7
  %v635 = vsub.s32 1, %v634
  %v636 = vrot.slane %v627, %v635
  %v637 = vlaneseq
  %v638 = vshrl.u32 %v637, 7
  %v639 = vsub.s32 2, %v638
  %v640 = vrot.slane %v627, %v639
  %v641 = vlaneseq
  %v642 = vshrl.u32 %v641, 7
  %v643 = vsub.s32 3, %v642
  %v644 = vrot.slane %v627, %v643
  %649 = vmatprep.subr.mxu0 %v564
  %650 = vmatpush1.msra.mxu0 %v563
  %651 = vmatprep.subr.mxu0 %v568
  %652 = vmatpush1.msra.mxu0 %v567
  %653 = vmatprep.subr.mxu0 %v572
  %654 = vmatpush1.msra.mxu0 %v571
  %655 = vmatprep.subr.mxu0 %v576
  %656 = vmatpush1.msra.mxu0 %v575
  %657 = vmatprep.subr.mxu0 %v580
  %658 = vmatpush1.msra.mxu0 %v579
  %659 = vmatprep.subr.mxu0 %v584
  %660 = vmatpush1.msra.mxu0 %v583
  %661 = vmatprep.subr.mxu0 %v588
  %662 = vmatpush1.msra.mxu0 %v587
  %663 = vmatprep.subr.mxu0 %v592
  %664 = vmatpush1.msra.mxu0 %v591
  %665 = vmatprep.subr.mxu0 %v596
  %666 = vmatpush1.msra.mxu0 %v595
  %667 = vmatprep.subr.mxu0 %v600
  %668 = vmatpush1.msra.mxu0 %v599
  %669 = vmatprep.subr.mxu0 %v604
  %670 = vmatpush1.msra.mxu0 %v603
  %671 = vmatprep.subr.mxu0 %v608
  %672 = vmatpush1.msra.mxu0 %v607
  %673 = vmatprep.subr.mxu0 %v612
  %674 = vmatpush1.msra.mxu0 %v611
  %675 = vmatprep.subr.mxu0 %v616
  %676 = vmatpush1.msra.mxu0 %v615
  %677 = vmatprep.subr.mxu0 %v620
  %678 = vmatpush1.msra.mxu0 %v619
  %679 = vmatprep.subr.mxu0 %v624
  %680 = vmatpush1.msra.mxu0 %v623
  %681 = vmatprep.subr.mxu0 0.0
  %682 = vmatpush1.msra.mxu0 0.0
  %683 = vmatprep.subr.mxu0 0.0
  %684 = vmatpush1.msra.mxu0 0.0
  %685 = vmatprep.subr.mxu0 0.0
  %686 = vmatpush1.msra.mxu0 0.0
  %687 = vmatprep.subr.mxu0 0.0
  %688 = vmatpush1.msra.mxu0 0.0
  %689 = vmatprep.subr.mxu0 0.0
  %690 = vmatpush1.msra.mxu0 0.0
  %691 = vmatprep.subr.mxu0 0.0
  %692 = vmatpush1.msra.mxu0 0.0
  %693 = vmatprep.subr.mxu0 0.0
  %694 = vmatpush1.msra.mxu0 0.0
  %695 = vmatprep.subr.mxu0 0.0
  %696 = vmatpush1.msra.mxu0 0.0
  %697 = vmatprep.subr.mxu0 0.0
  %698 = vmatpush1.msra.mxu0 0.0
  %699 = vmatprep.subr.mxu0 0.0
  %700 = vmatpush1.msra.mxu0 0.0
  %701 = vmatprep.subr.mxu0 0.0
  %702 = vmatpush1.msra.mxu0 0.0
  %703 = vmatprep.subr.mxu0 0.0
  %704 = vmatpush1.msra.mxu0 0.0
  %705 = vmatprep.subr.mxu0 0.0
  %706 = vmatpush1.msra.mxu0 0.0
  %707 = vmatprep.subr.mxu0 0.0
  %708 = vmatpush1.msra.mxu0 0.0
  %709 = vmatprep.subr.mxu0 0.0
  %710 = vmatpush1.msra.mxu0 0.0
  %711 = vmatprep.subr.mxu0 0.0
  %712 = vmatpush1.msra.mxu0 0.0
  %713 = vmatprep.mubr.f32.mxu0 0.0
  %714 = vmatmul.mubr.f32.gmra.mrb[0].mxu0 %v562
  %v715 = vpop.f32.mrb[0].mxu0
  %v716 = vadd.f32 %v632, %v715
  %v717 = vpop.f32.mrb[0].mxu0
  %v718 = vadd.f32 %v636, %v717
  %719 = vdwg.mxu0
  %720 = vmatprep.subr.mxu0 %v566
  %721 = vmatpush1.msra.mxu0 %v565
  %722 = vmatprep.subr.mxu0 %v570
  %723 = vmatpush1.msra.mxu0 %v569
  %724 = vmatprep.subr.mxu0 %v574
  %725 = vmatpush1.msra.mxu0 %v573
  %726 = vmatprep.subr.mxu0 %v578
  %727 = vmatpush1.msra.mxu0 %v577
  %728 = vmatprep.subr.mxu0 %v582
  %729 = vmatpush1.msra.mxu0 %v581
  %730 = vmatprep.subr.mxu0 %v586
  %731 = vmatpush1.msra.mxu0 %v585
  %732 = vmatprep.subr.mxu0 %v590
  %733 = vmatpush1.msra.mxu0 %v589
  %734 = vmatprep.subr.mxu0 %v594
  %735 = vmatpush1.msra.mxu0 %v593
  %736 = vmatprep.subr.mxu0 %v598
  %737 = vmatpush1.msra.mxu0 %v597
  %738 = vmatprep.subr.mxu0 %v602
  %739 = vmatpush1.msra.mxu0 %v601
  %740 = vmatprep.subr.mxu0 %v606
  %741 = vmatpush1.msra.mxu0 %v605
  %742 = vmatprep.subr.mxu0 %v610
  %743 = vmatpush1.msra.mxu0 %v609
  %744 = vmatprep.subr.mxu0 %v614
  %745 = vmatpush1.msra.mxu0 %v613
  %746 = vmatprep.subr.mxu0 %v618
  %747 = vmatpush1.msra.mxu0 %v617
  %748 = vmatprep.subr.mxu0 %v622
  %749 = vmatpush1.msra.mxu0 %v621
  %750 = vmatprep.subr.mxu0 %v626
  %751 = vmatpush1.msra.mxu0 %v625
  %752 = vmatprep.subr.mxu0 0.0
  %753 = vmatpush1.msra.mxu0 0.0
  %754 = vmatprep.subr.mxu0 0.0
  %755 = vmatpush1.msra.mxu0 0.0
  %756 = vmatprep.subr.mxu0 0.0
  %757 = vmatpush1.msra.mxu0 0.0
  %758 = vmatprep.subr.mxu0 0.0
  %759 = vmatpush1.msra.mxu0 0.0
  %760 = vmatprep.subr.mxu0 0.0
  %761 = vmatpush1.msra.mxu0 0.0
  %762 = vmatprep.subr.mxu0 0.0
  %763 = vmatpush1.msra.mxu0 0.0
  %764 = vmatprep.subr.mxu0 0.0
  %765 = vmatpush1.msra.mxu0 0.0
  %766 = vmatprep.subr.mxu0 0.0
  %767 = vmatpush1.msra.mxu0 0.0
  %768 = vmatprep.subr.mxu0 0.0
  %769 = vmatpush1.msra.mxu0 0.0
  %770 = vmatprep.subr.mxu0 0.0
  %771 = vmatpush1.msra.mxu0 0.0
  %772 = vmatprep.subr.mxu0 0.0
  %773 = vmatpush1.msra.mxu0 0.0
  %774 = vmatprep.subr.mxu0 0.0
  %775 = vmatpush1.msra.mxu0 0.0
  %776 = vmatprep.subr.mxu0 0.0
  %777 = vmatpush1.msra.mxu0 0.0
  %778 = vmatprep.subr.mxu0 0.0
  %779 = vmatpush1.msra.mxu0 0.0
  %780 = vmatprep.subr.mxu0 0.0
  %781 = vmatpush1.msra.mxu0 0.0
  %782 = vmatprep.subr.mxu0 0.0
  %783 = vmatpush1.msra.mxu0 0.0
  %784 = vmatprep.mubr.f32.mxu0 0.0
  %785 = vmatmul.mubr.f32.gmra.mrb[0].mxu0 %v562
  %v786 = vpop.f32.mrb[0].mxu0
  %v787 = vadd.f32 %v640, %v786
  %v788 = vpop.f32.mrb[0].mxu0
  %v789 = vadd.f32 %v644, %v788
  %790 = vdwg.mxu0
  %v791 = vmax.f32 %v716, 0.0
  %v792 = vmax.f32 %v718, 0.0
  %v793 = vmax.f32 %v787, 0.0
  %v794 = vmax.f32 %v789, 0.0
  %v795 = vmax.f32 %v791, %v792
  %v796 = vmax.f32 %v793, %v794
  %v797 = vmax.f32 %v795, %v796
  %v798 = vld [vmem:[%s5] sm:$0xff]
  %v799 = vld [vmem:[%s5 + $0x8] sm:$0xff]
  %v800 = vld [vmem:[%s5 + $0x10] sm:$0xff]
  %v801 = vld [vmem:[%s5 + $0x18] sm:$0xff]
  %v802 = vld [vmem:[%s5 + $0x20] sm:$0xff]
  %v803 = vld [vmem:[%s5 + $0x28] sm:$0xff]
  %v804 = vld [vmem:[%s5 + $0x30] sm:$0xff]
  %v805 = vld [vmem:[%s5 + $0x38] sm:$0xff]
  %v806 = vld [vmem:[%s5 + $0x40] sm:$0xff]
  %v807 = vld [vmem:[%s5 + $0x48] sm:$0xff]
  %v808 = vld [vmem:[%s5 + $0x50] sm:$0xff]
  %v809 = vld [vmem:[%s5 + $0x58] sm:$0xff]
  %v810 = vld [vmem:[%s5 + $0x60] sm:$0xff]
  %v811 = vld [vmem:[%s5 + $0x68] sm:$0xff]
  %v812 = vld [vmem:[%s5 + $0x70] sm:$0xff]
  %v813 = vld [vmem:[%s5 + $0x78] sm:$0xff]
  %v814 = vld [vmem:[%s6] sm:$0x1]
  %v816 = vlaneseq
  %v817 = vshrl.u32 %v816, 7
  %v818 = vsub.s32 0, %v817
  %v819 = vrot.slane %v814, %v818
  %821 = vmatprep.subr.mxu0 0.0
  %822 = vmatpush1.msra.mxu0 %v798
  %823 = vmatprep.subr.mxu0 0.0
  %824 = vmatpush1.msra.mxu0 %v799
  %825 = vmatprep.subr.mxu0 0.0
  %826 = vmatpush1.msra.mxu0 %v800
  %827 = vmatprep.subr.mxu0 0.0
  %828 = vmatpush1.msra.mxu0 %v801
  %829 = vmatprep.subr.mxu0 0.0
  %830 = vmatpush1.msra.mxu0 %v802
  %831 = vmatprep.subr.mxu0 0.0
  %832 = vmatpush1.msra.mxu0 %v803
  %833 = vmatprep.subr.mxu0 0.0
  %834 = vmatpush1.msra.mxu0 %v804
  %835 = vmatprep.subr.mxu0 0.0
  %836 = vmatpush1.msra.mxu0 %v805
  %837 = vmatprep.subr.mxu0 0.0
  %838 = vmatpush1.msra.mxu0 %v806
  %839 = vmatprep.subr.mxu0 0.0
  %840 = vmatpush1.msra.mxu0 %v807
  %841 = vmatprep.subr.mxu0 0.0
  %842 = vmatpush1.msra.mxu0 %v808
  %843 = vmatprep.subr.mxu0 0.0
  %844 = vmatpush1.msra.mxu0 %v809
  %845 = vmatprep.subr.mxu0 0.0
  %846 = vmatpush1.msra.mxu0 %v810
  %847 = vmatprep.subr.mxu0 0.0
  %848 = vmatpush1.msra.mxu0 %v811
  %849 = vmatprep.subr.mxu0 0.0
  %850 = vmatpush1.msra.mxu0 %v812
  %851 = vmatprep.subr.mxu0 0.0
  %852 = vmatpush1.msra.mxu0 %v813
  %853 = vmatprep.subr.mxu0 0.0
  %854 = vmatpush1.msra.mxu0 0.0
  %855 = vmatprep.subr.mxu0 0.0
  %856 = vmatpush1.msra.mxu0 0.0
  %857 = vmatprep.subr.mxu0 0.0
  %858 = vmatpush1.msra.mxu0 0.0
  %859 = vmatprep.subr.mxu0 0.0
  %860 = vmatpush1.msra.mxu0 0.0
  %861 = vmatprep.subr.mxu0 0.0
  %862 = vmatpush1.msra.mxu0 0.0
  %863 = vmatprep.subr.mxu0 0.0
  %864 = vmatpush1.msra.mxu0 0.0
  %865 = vmatprep.subr.mxu0 0.0
  %866 = vmatpush1.msra.mxu0 0.0
  %867 = vmatprep.subr.mxu0 0.0
  %868 = vmatpush1.msra.mxu0 0.0
  %869 = vmatprep.subr.mxu0 0.0
  %870 = vmatpush1.msra.mxu0 0.0
  %871 = vmatprep.subr.mxu0 0.0
  %872 = vmatpush1.msra.mxu0 0.0
  %873 = vmatprep.subr.mxu0 0.0
  %874 = vmatpush1.msra.mxu0 0.0
  %875 = vmatprep.subr.mxu0 0.0
  %876 = vmatpush1.msra.mxu0 0.0
  %877 = vmatprep.subr.mxu0 0.0
  %878 = vmatpush1.msra.mxu0 0.0
  %879 = vmatprep.subr.mxu0 0.0
  %880 = vmatpush1.msra.mxu0 0.0
  %881 = vmatprep.subr.mxu0 0.0
  %882 = vmatpush1.msra.mxu0 0.0
  %883 = vmatprep.subr.mxu0 0.0
  %884 = vmatpush1.msra.mxu0 0.0
  %885 = vmatprep.mubr.f32.mxu0 0.0
  %886 = vmatmul.mubr.f32.gmra.mrb[0].mxu0 %v797
  %v887 = vpop.f32.mrb[0].mxu0
  %v888 = vadd.f32 %v819, %v887
  %v889 = vpop.f32.mrb[0].mxu0
  %890 = vdwg.mxu0
  %vm891 = vcmask 15360
  %892 = vst.msk [vmem:[%s7] sm:$0xff] %vm891, %v888
  // Predicated region
  $region30: #{simplenet_forward.1} parent=0 // pred_check
    _
  $region31: #{simplenet_forward.1} parent=0 // pred_check_branch
    %894 = sbr.rel (0) target = $region33
  $region32: #{simplenet_forward.1} parent=0 // pred_region
    _
  $region33: #{simplenet_forward.1} parent=0 // pred_fallthru
    _
  // Predicated region
  $region34: #{simplenet_forward.1} parent=0 // pred_check
    _
  $region35: #{simplenet_forward.1} parent=0 // pred_check_branch
    %896 = sbr.rel (0) target = $region37
  $region36: #{simplenet_forward.1} parent=0 // pred_region
    _
  $region37: #{simplenet_forward.1} parent=0 // pred_fallthru
    _

</llo_original>
